<compile_context>
chip_gen: v6e
topology: v6e:2x2x1
jax: 0.10.0
libtpu: 0.0.40
codegen_flags: <defaults>
</compile_context>

<pallas_src>
import jax
import jax.numpy as jnp
from jax.experimental import pallas as pl
from jax.experimental.pallas import tpu as pltpu


# ----------------------------- tuning knobs ---------------------------------
TARGET_BLOCK_BYTES = 4 << 20    # ~4 MiB blocks; in+out double-buffered ~16 MiB
MIN_BLOCK_BYTES = 512 << 10     # only split for multi-core if blocks stay >= this
MIN_GRID_STEPS = 4              # enough steps to shard across v7x's 2 TensorCores
VMEM_LIMIT_BYTES = 32 * 1024 * 1024


def _locked_dropout_kernel(x_ref, mask_ref, o_ref):
    # Pure elementwise hot path; the size-1 leading dim of the mask block
    # broadcasts over the time dimension of the x block.
    o_ref[...] = x_ref[...] * mask_ref[...]


# ----------------------------- tiling helpers --------------------------------
def _sublanes(dtype):
    """Native sublane packing for dtype: 8 (f32), 16 (bf16/f16), 32 (int8/fp8)."""
    return max(8, 32 // jnp.dtype(dtype).itemsize)


def _pick_lane_tile(extent, itemsize, sub):
    """Tile the lane (last) axis only when even `sub` rows of the full width
    would overflow the block budget; otherwise leave it un-tiled (no masked
    lanes, lane-dense stores)."""
    if sub * extent * itemsize <= TARGET_BLOCK_BYTES:
        return int(extent)
    tile = (TARGET_BLOCK_BYTES // (sub * itemsize) // 128) * 128
    return int(max(128, min(tile, extent)))


def _pick_row_tile(extent, row_bytes, align, other_steps):
    """Tile size along the time axis targeting ~TARGET_BLOCK_BYTES per block,
    aligned to `align` sublanes.  For problems big enough to care, also cap it
    so the total grid has >= MIN_GRID_STEPS steps (keeps both v7x TCs busy)."""
    tile = max(1, TARGET_BLOCK_BYTES // max(1, row_bytes))
    big_enough = extent * row_bytes >= MIN_GRID_STEPS * MIN_BLOCK_BYTES
    if other_steps < MIN_GRID_STEPS and big_enough:
        tile = min(tile, max(1, (extent * other_steps) // MIN_GRID_STEPS))
    if tile >= extent:
        return int(extent)
    tile = max(align, (tile // align) * align)
    return int(min(tile, extent))


def _compiler_params(n_axes):
    return pltpu.CompilerParams(
        # All grid axes are independent (mask is an input, output blocks are
        # disjoint) -> shardable across TensorCores on v7x, neutral elsewhere.
        dimension_semantics=("parallel",) * n_axes,
        vmem_limit_bytes=VMEM_LIMIT_BYTES,
    )


# ------------------------------- runners --------------------------------------
def _run_time_major_2d(x2d, mask2d, donate_x):
    """x2d: (T, B*H) lane-dense layout (used when H % 128 == 0)."""
    T, BH = x2d.shape
    itemsize = x2d.dtype.itemsize
    sub = _sublanes(x2d.dtype)
    tile_bh = _pick_lane_tile(BH, itemsize, sub)
    n_bh = pl.cdiv(BH, tile_bh)
    tile_t = _pick_row_tile(T, tile_bh * itemsize, sub, other_steps=n_bh)
    return pl.pallas_call(
        _locked_dropout_kernel,
        out_shape=jax.ShapeDtypeStruct((T, BH), x2d.dtype),
        grid=(pl.cdiv(T, tile_t), n_bh),
        in_specs=[
            pl.BlockSpec((tile_t, tile_bh), lambda t, j: (t, j)),
            pl.BlockSpec((1, tile_bh), lambda t, j: (0, j)),
        ],
        out_specs=pl.BlockSpec((tile_t, tile_bh), lambda t, j: (t, j)),
        compiler_params=_compiler_params(2),
        input_output_aliases={0: 0} if donate_x else {},
    )(x2d, mask2d)


def _run_time_major_3d(x3d, mask3d, donate_x):
    """x3d: (T, B, H) kept 3D (H not a multiple of 128 -> avoid relayout)."""
    T, B, H = x3d.shape
    itemsize = x3d.dtype.itemsize
    sub = _sublanes(x3d.dtype)
    # B is the sublane axis of each block: keep it whole if one (B, H) slab
    # fits the budget, otherwise split it on sublane-packing boundaries.
    if B * H * itemsize <= TARGET_BLOCK_BYTES:
        tile_b = B
    else:
        tile_b = (TARGET_BLOCK_BYTES // (H * itemsize) // sub) * sub
        tile_b = int(max(sub, min(tile_b, B)))
    n_b = pl.cdiv(B, tile_b)
    # tile_t is an outer block dim here -> no sublane alignment needed.
    tile_t = _pick_row_tile(T, tile_b * H * itemsize, 1, other_steps=n_b)
    return pl.pallas_call(
        _locked_dropout_kernel,
        out_shape=jax.ShapeDtypeStruct((T, B, H), x3d.dtype),
        grid=(pl.cdiv(T, tile_t), n_b),
        in_specs=[
            pl.BlockSpec((tile_t, tile_b, H), lambda t, b: (t, b, 0)),
            pl.BlockSpec((1, tile_b, H), lambda t, b: (0, b, 0)),
        ],
        out_specs=pl.BlockSpec((tile_t, tile_b, H), lambda t, b: (t, b, 0)),
        compiler_params=_compiler_params(2),
        input_output_aliases={0: 0} if donate_x else {},
    )(x3d, mask3d)


def _run_batch_major(x3d, mask3d, donate_x):
    """x3d: (B, T, H) handled natively (no transposes); mask3d: (B, 1, H)."""
    B, T, H = x3d.shape
    itemsize = x3d.dtype.itemsize
    sub = _sublanes(x3d.dtype)
    tile_h = _pick_lane_tile(H, itemsize, sub)
    n_h = pl.cdiv(H, tile_h)
    tile_t = _pick_row_tile(T, tile_h * itemsize, sub, other_steps=B * n_h)
    return pl.pallas_call(
        _locked_dropout_kernel,
        out_shape=jax.ShapeDtypeStruct((B, T, H), x3d.dtype),
        grid=(B, pl.cdiv(T, tile_t), n_h),
        in_specs=[
            # Batch dim squeezed out -> kernel sees (tile_t, tile_h).
            pl.BlockSpec((None, tile_t, tile_h), lambda b, t, h: (b, t, h)),
            # Mask squeezed to (1, tile_h); size-1 second-to-last block dim is
            # the full extent of the mask's time dim, so tiling rules hold.
            pl.BlockSpec((None, 1, tile_h), lambda b, t, h: (b, 0, h)),
        ],
        out_specs=pl.BlockSpec((None, tile_t, tile_h), lambda b, t, h: (b, t, h)),
        compiler_params=_compiler_params(3),
        input_output_aliases={0: 0} if donate_x else {},
    )(x3d, mask3d)


# ------------------------------- public API -----------------------------------
def locked_dropout(x, key, *, p=0.5, training=True, batch_first=False,
                   donate_x=False):
    """Locked (variational) dropout.

    batch_first=False: x is (T, B, H) — one (B, H) mask shared over T.
    batch_first=True : x is (B, T, H) — one (B, H) mask shared over T.
    donate_x=True    : alias the output onto x's HBM buffer (caller must not
                       reuse x afterwards).
    """
    if (not training) or p == 0.0:
        return x
    assert x.ndim == 3, "LockedDropout expects a rank-3 input"

    if batch_first:
        B, T, H = x.shape
    else:
        T, B, H = x.shape

    # Sample the "locked" mask once, host-side PRNG (the in-kernel PRNG has no
    # interpret lowering).  Scale 1/(1-p) is folded in, cast to x.dtype.
    # NOTE: p == 1.0 yields 0 * inf = NaN, matching the PyTorch reference.
    keep_prob = 1.0 - p
    keep = jax.random.bernoulli(key, keep_prob, (B, H))
    scale = (jnp.float32(1.0) / jnp.float32(keep_prob)).astype(x.dtype)
    mask = keep.astype(x.dtype) * scale                       # (B, H)

    if batch_first:
        return _run_batch_major(x, mask.reshape(B, 1, H), donate_x)

    if H % 128 == 0:
        # Layout-preserving flatten -> lane-dense 2D layout (unmasked stores).
        y2d = _run_time_major_2d(x.reshape(T, B * H),
                                 mask.reshape(1, B * H), donate_x)
        return y2d.reshape(T, B, H)

    # H not lane-aligned: keep 3D to avoid an XLA relayout copy on each side.
    return _run_time_major_3d(x, mask.reshape(1, B, H), donate_x)


# --------------------------------- self-test -----------------------------------
if __name__ == "__main__":
    key = jax.random.PRNGKey(0)
    kx, kmask = jax.random.split(key)

    T, B, H = 8, 2, 32
    p = 0.5
    keep_prob = 1.0 - p
    x = jax.random.normal(kx, (T, B, H), dtype=jnp.float32)

    # Reference mask: identical sampling to what locked_dropout does internally.
    ref_mask = (jax.random.bernoulli(kmask, keep_prob, (B, H)).astype(x.dtype)
                * jnp.asarray(1.0 / keep_prob, x.dtype))

    # --- time-major path, H not a multiple of 128 (3D kernel) ---
    y = jax.block_until_ready(locked_dropout(x, kmask, p=p, training=True))
    assert jnp.allclose(y, x * ref_mask[None, :, :]), "time-major (3D) mismatch"

    # --- batch-first path (native, no transposes) ---
    xb = jnp.swapaxes(x, 0, 1)                                  # (B, T, H)
    yb = jax.block_until_ready(
        locked_dropout(xb, kmask, p=p, training=True, batch_first=True))
    assert jnp.allclose(yb, xb * ref_mask[:, None, :]), "batch-first mismatch"
    assert jnp.allclose(jnp.swapaxes(yb, 0, 1), y), "paths disagree on values"

    # --- lane-dense 2D path (H multiple of 128) ---
    T2, B2, H2 = 16, 2, 128
    x2 = jax.random.normal(kx, (T2, B2, H2), dtype=jnp.float32)
    ref_mask2 = (jax.random.bernoulli(kmask, keep_prob, (B2, H2)).astype(x2.dtype)
                 * jnp.asarray(1.0 / keep_prob, x2.dtype))
    y2 = jax.block_until_ready(locked_dropout(x2, kmask, p=p, training=True))
    assert jnp.allclose(y2, x2 * ref_mask2[None, :, :]), "lane-dense (2D) mismatch"

    # --- eval / p == 0 paths are identity ---
    assert bool(jnp.all(locked_dropout(x, kmask, p=0.0) == x))
    assert bool(jnp.all(locked_dropout(x, kmask, p=0.5, training=False) == x))

    print("KERNEL_OK")
</pallas_src>

<mosaic_0001>
module attributes {stable_mosaic.version = 11 : i64} {
  func.func @_locked_dropout_kernel(%arg0: i32, %arg1: i32, %arg2: memref<8x2x32xf32, #tpu.memory_space<vmem>>, %arg3: memref<1x2x32xf32, #tpu.memory_space<vmem>>, %arg4: memref<8x2x32xf32, #tpu.memory_space<vmem>>) attributes {dimension_semantics = [#tpu.dimension_semantics<parallel>, #tpu.dimension_semantics<parallel>], iteration_bounds = array<i64: 1, 1>, scalar_prefetch = 0 : i64, scratch_operands = 0 : i64, tpu.core_type = #tpu.core_type<tc>, window_params = [{transform_indices = @transform_0, window_bounds = array<i64: 8, 2, 32>}, {transform_indices = @transform_1, window_bounds = array<i64: 1, 2, 32>}, {transform_indices = @transform_2, window_bounds = array<i64: 8, 2, 32>}]} {
    %c0 = arith.constant 0 : index
    %c0_0 = arith.constant 0 : index
    %c0_1 = arith.constant 0 : index
    %0 = vector.load %arg2[%c0, %c0_0, %c0_1] : memref<8x2x32xf32, #tpu.memory_space<vmem>>, vector<8x2x32xf32>
    %c0_2 = arith.constant 0 : index
    %c0_3 = arith.constant 0 : index
    %c0_4 = arith.constant 0 : index
    %1 = vector.load %arg3[%c0_2, %c0_3, %c0_4] : memref<1x2x32xf32, #tpu.memory_space<vmem>>, vector<1x2x32xf32>
    %2 = vector.broadcast %1 : vector<1x2x32xf32> to vector<8x2x32xf32>
    %3 = arith.mulf %0, %2 : vector<8x2x32xf32>
    %c0_5 = arith.constant 0 : index
    %c0_6 = arith.constant 0 : index
    %c0_7 = arith.constant 0 : index
    %4 = vector.load %arg4[%c0_5, %c0_6, %c0_7] : memref<8x2x32xf32, #tpu.memory_space<vmem>>, vector<8x2x32xf32>
    tpu.vector_store %arg4[%c0_5, %c0_6, %c0_7], %3 {strides = array<i32>} : memref<8x2x32xf32, #tpu.memory_space<vmem>>, vector<8x2x32xf32>,
    return
  }
  func.func @transform_0(%arg0: i32, %arg1: i32) -> (i32, i32, i32) {
    %c0_i32 = arith.constant 0 : i32
    %c0_i32_0 = arith.constant 0 : i32
    return %arg0, %arg1, %c0_i32 : i32, i32, i32
  }
  func.func @transform_1(%arg0: i32, %arg1: i32) -> (i32, i32, i32) {
    %c0_i32 = arith.constant 0 : i32
    %c0_i32_0 = arith.constant 0 : i32
    %c0_i32_1 = arith.constant 0 : i32
    return %c0_i32, %arg1, %c0_i32_0 : i32, i32, i32
  }
  func.func @transform_2(%arg0: i32, %arg1: i32) -> (i32, i32, i32) {
    %c0_i32 = arith.constant 0 : i32
    %c0_i32_0 = arith.constant 0 : i32
    return %arg0, %arg1, %c0_i32 : i32, i32, i32
  }
}

</mosaic_0001>

<llo_original>
// kernel: tpu_custom_call.1
$region0: #{tpu_custom_call.1}
  #allocation0 [shape = 'u32[]', space=smem, size = 0x4, offset = 0x4, fixed_abs, tag = 'smem constant byte address 0x4 - core index']
  #allocation1 [shape = 'u32[144,128]{1,0:T(1,128)}', space=vmem, size = 0x12000, scoped, tag = 'internal scratch']
  %s0 = inlined_call_operand.hbm [shape: f32[8,2,32], index: 0, kind: input, shape index: {}]
  %s1 = inlined_call_operand.hbm [shape: f32[1,2,32], index: 1, kind: input, shape index: {}]
  %s2 = inlined_call_operand.hbm [shape: f32[8,2,32], index: 2, kind: output, shape index: {}]
  %s3 = sld [smem:[#allocation0]]
  $region26: #{tpu_custom_call.1} parent=0
    _
  %s5 = ssub.s32 1, %s3
  %s6 = scalar_select 0, %s5, %s3
  $region1: #{tpu_custom_call.1} parent=0
    #allocation2 [shape = 'u8[8192]{0}', space=vmem, size = 0x2000, scoped, tag = 'input window, operand 0, single buffered']
    #allocation3 [shape = 's32[1]{0}', space=sflag, size = 0x4, scoped, tag = 'scoped memory for tpu_custom_call.1']
    #allocation4 [shape = 's32[1]{0}', space=sflag, size = 0x4, scoped, tag = 'scoped memory for tpu_custom_call.1']
    #allocation5 [shape = 'u8[1024]{0}', space=vmem, size = 0x400, scoped, tag = 'input window, operand 1, single buffered']
    #allocation6 [shape = 's32[1]{0}', space=sflag, size = 0x4, scoped, tag = 'scoped memory for tpu_custom_call.1']
    #allocation7 [shape = 'u8[8192]{0}', space=vmem, size = 0x2000, scoped, tag = 'output window, operand 0, single buffered']
    %7 = vsyncpa [#allocation3], 0
    %8 = vsyncpa [#allocation6], 0
    %9 = vsyncpa [#allocation4], 0
    // Predicated region
    $region2: #{tpu_custom_call.1} parent=1 // pred_check
      _
    $region3: #{tpu_custom_call.1} parent=1 // pred_check_branch
      %11 = sbr.rel (0) target = $region5
    $region4: #{tpu_custom_call.1} parent=1 // pred_region
      %s13 = ssub.s32 256, 256
      %14 = vsyncadd [#allocation3], %s13
      %s15 = sshll.u32 [#allocation2], 4
      %s16 = int_to_ptr.vmem [resolvable:$true] %s15
      %21 = dma.hbm_to_vmem [thread:$0]  %s0, 256, %s16, [#allocation3], 32, 32, 2
    $region5: #{tpu_custom_call.1} parent=1 // pred_fallthru
      _
    // Predicated region
    $region6: #{tpu_custom_call.1} parent=1 // pred_check
      _
    $region7: #{tpu_custom_call.1} parent=1 // pred_check_branch
      %23 = sbr.rel (0) target = $region9
    $region8: #{tpu_custom_call.1} parent=1 // pred_region
      %s25 = ssub.s32 32, 32
      %26 = vsyncadd [#allocation6], %s25
      %s28 = sshll.u32 [#allocation5], 4
      %s29 = int_to_ptr.vmem [resolvable:$true] %s28
      %31 = dma.hbm_to_vmem [thread:$0]  %s1, 32, %s29, [#allocation6]
    $region9: #{tpu_custom_call.1} parent=1 // pred_fallthru
      _
    // Predicated region
    $region10: #{tpu_custom_call.1} parent=1 // pred_check
      _
    $region11: #{tpu_custom_call.1} parent=1 // pred_check_branch
      %33 = sbr.rel (0) target = $region13
    $region12: #{tpu_custom_call.1} parent=1 // pred_region
      %34 = dma.done [#allocation3], 256
    $region13: #{tpu_custom_call.1} parent=1 // pred_fallthru
      _
    // Predicated region
    $region14: #{tpu_custom_call.1} parent=1 // pred_check
      _
    $region15: #{tpu_custom_call.1} parent=1 // pred_check_branch
      %36 = sbr.rel (0) target = $region17
    $region16: #{tpu_custom_call.1} parent=1 // pred_region
      %37 = dma.done [#allocation6], 32
    $region17: #{tpu_custom_call.1} parent=1 // pred_fallthru
      _
    %v38 = vld [vmem:[#allocation2] sm:$0x3]
    %v39 = vld [vmem:[#allocation2 + $0x2] sm:$0x3]
    %v40 = vld [vmem:[#allocation2 + $0x4] sm:$0x3]
    %v41 = vld [vmem:[#allocation2 + $0x6] sm:$0x3]
    %v42 = vld [vmem:[#allocation2 + $0x8] sm:$0x3]
    %v43 = vld [vmem:[#allocation2 + $0xa] sm:$0x3]
    %v44 = vld [vmem:[#allocation2 + $0xc] sm:$0x3]
    %v45 = vld [vmem:[#allocation2 + $0xe] sm:$0x3]
    %v46 = vld [vmem:[#allocation5] sm:$0x3]
    %v47 = vmul.f32 %v38, %v46
    %v48 = vmul.f32 %v39, %v46
    %v49 = vmul.f32 %v40, %v46
    %v50 = vmul.f32 %v41, %v46
    %v51 = vmul.f32 %v42, %v46
    %v52 = vmul.f32 %v43, %v46
    %v53 = vmul.f32 %v44, %v46
    %v54 = vmul.f32 %v45, %v46
    %vm55 = vcmask 254976
    %56 = vst.msk [vmem:[#allocation7] sm:$0x3] %vm55, %v47
    %57 = vst.msk [vmem:[#allocation7 + $0x2] sm:$0x3] %vm55, %v48
    %58 = vst.msk [vmem:[#allocation7 + $0x4] sm:$0x3] %vm55, %v49
    %59 = vst.msk [vmem:[#allocation7 + $0x6] sm:$0x3] %vm55, %v50
    %60 = vst.msk [vmem:[#allocation7 + $0x8] sm:$0x3] %vm55, %v51
    %61 = vst.msk [vmem:[#allocation7 + $0xa] sm:$0x3] %vm55, %v52
    %62 = vst.msk [vmem:[#allocation7 + $0xc] sm:$0x3] %vm55, %v53
    %63 = vst.msk [vmem:[#allocation7 + $0xe] sm:$0x3] %vm55, %v54
    // Predicated region
    $region18: #{tpu_custom_call.1} parent=1 // pred_check
      _
    $region19: #{tpu_custom_call.1} parent=1 // pred_check_branch
      %65 = sbr.rel (0) target = $region21
    $region20: #{tpu_custom_call.1} parent=1 // pred_region
      %s67 = ssub.s32 256, 256
      %68 = vsyncadd [#allocation4], %s67
      %s69 = sshll.u32 [#allocation7], 4
      %s70 = int_to_ptr.vmem [resolvable:$true] %s69
      %75 = dma.vmem_to_hbm [thread:$0]  %s70, 256, %s2, [#allocation4], 32, 32, 2
    $region21: #{tpu_custom_call.1} parent=1 // pred_fallthru
      _
    // Predicated region
    $region22: #{tpu_custom_call.1} parent=1 // pred_check
      _
    $region23: #{tpu_custom_call.1} parent=1 // pred_check_branch
      %77 = sbr.rel (0) target = $region25
    $region24: #{tpu_custom_call.1} parent=1 // pred_region
      %78 = dma.done [#allocation4], 256
    $region25: #{tpu_custom_call.1} parent=1 // pred_fallthru
      _
    %79 = vsyncpa [#allocation3], 1
    %80 = vsyncpa [#allocation6], 1
    %81 = vsyncpa [#allocation4], 1

</llo_original>
